<compile_context>
chip_gen: v7x
topology: tpu7x:2x2x1
jax: 0.10.0
libtpu: 0.0.40
codegen_flags: <defaults>
</compile_context>

<pallas_src>
import functools

import jax
import jax.numpy as jnp
from jax.experimental import pallas as pl
from jax.experimental.pallas import tpu as pltpu


def _swish(x):
    return x * jax.nn.sigmoid(x)


def _round_up(x, m):
    return ((x + m - 1) // m) * m


def init_p_kernel(w1_ref, b1_ref,              # SMEM scalars (1, 1)
                  idx_ji_ref, idx_kj_ref,      # [TILE_T, 1] int32 (streamed)
                  area_ref,                    # [TILE_T, H]       (streamed)
                  sbf_ref,                     # [TILE_T, SR]      (streamed)
                  e_ref,                       # [E_pad, H]   VMEM-resident
                  w_sbf_ref, b_sbf_ref,        # [SR, H], [1, H]  VMEM-resident
                  w_lin_ref, b_lin_ref,        # [4H, H], [1, H]  VMEM-resident
                  p_ref,                       # out [TILE_T, H]
                  x_scr,                       # scratch [TILE_T, 4H] matmul_dtype
                  *, matmul_dtype):
    tile_t, h = area_ref.shape
    e_rows = e_ref.shape[0]

    w1 = w1_ref[0, 0]
    b1 = b1_ref[0, 0]

    # --- fused edge-row gather: one-hot @ e (MXU is idle; e is VMEM-resident)
    # TODO(synk): for very large edge counts switch to an in-kernel dynamic /
    # DMA gather; the one-hot intermediate is [TILE_T, E_pad].
    e_m = e_ref[...].astype(matmul_dtype)
    col = jax.lax.broadcasted_iota(jnp.int32, (tile_t, e_rows), 1)
    oh_ji = (col == idx_ji_ref[...]).astype(matmul_dtype)
    oh_kj = (col == idx_kj_ref[...]).astype(matmul_dtype)
    x_scr[:, 0:h] = jnp.dot(
        oh_ji, e_m, preferred_element_type=jnp.float32).astype(x_scr.dtype)
    x_scr[:, h:2 * h] = jnp.dot(
        oh_kj, e_m, preferred_element_type=jnp.float32).astype(x_scr.dtype)

    # --- area & sbf branches: one swish pass over a [TILE_T, 2H] lane slab ---
    area_pre = area_ref[...].astype(jnp.float32) * w1 + b1
    sbf_pre = jnp.dot(sbf_ref[...].astype(matmul_dtype), w_sbf_ref[...],
                      preferred_element_type=jnp.float32) + b_sbf_ref[...]
    act = _swish(jnp.concatenate([area_pre, sbf_pre], axis=-1))
    x_scr[:, 2 * h:4 * h] = act.astype(x_scr.dtype)

    # --- p = swish(cat(...) @ W_lin + b): ONE K=4H MXU matmul from scratch ---
    acc = jnp.dot(x_scr[...], w_lin_ref[...], preferred_element_type=jnp.float32)
    # NOTE: H=32 < 128 lanes -> final store is masked; H is fixed by the model.
    p_ref[...] = _swish(acc + b_lin_ref[...]).astype(p_ref.dtype)


def init_p_forward(e, idx_ji, idx_kj, area, sbf, params, *,
                   max_tile_t=4096, matmul_dtype=jnp.bfloat16, out_dtype=None):
    """JAX wrapper reproducing init_p.forward. Returns (p, 1)."""
    T, H = area.shape
    SR = sbf.shape[1]
    E = e.shape[0]
    if out_dtype is None:
        out_dtype = area.dtype   # stream p back at the upstream storage dtype

    # ---- tile over T (no activation padding: Pallas masks the ragged tail).
    # Keep >= 2 grid steps whenever T allows so the "parallel" axis shards
    # across both v7x TensorCores; 16-row granularity covers f32 and bf16.
    max_tile_t = max(16, (max_tile_t // 16) * 16)
    tile_t = max(16, min(max_tile_t, _round_up(pl.cdiv(T, 2), 16)))
    grid = (pl.cdiv(T, tile_t),)

    # edge table: one tiny pad to an 8-row multiple; it stays VMEM-resident.
    E_pad = _round_up(E, 8)
    if E_pad != E:
        e = jnp.pad(e, ((0, E_pad - E), (0, 0)))

    idx_ji2 = idx_ji.reshape(T, 1).astype(jnp.int32)
    idx_kj2 = idx_kj.reshape(T, 1).astype(jnp.int32)

    w1 = params["weight1"].reshape(1, 1).astype(jnp.float32)
    b1 = params["bias1"].reshape(1, 1).astype(jnp.float32)
    w_sbf = params["w_sbf"].astype(matmul_dtype)            # [SR, H]
    b_sbf = params["b_sbf"].reshape(1, H).astype(jnp.float32)
    w_lin = params["w_lin"].astype(matmul_dtype)             # [4H, H]
    b_lin = params["b_lin"].reshape(1, H).astype(jnp.float32)

    # per-tile streamed rows (double-buffered by Pallas)
    row_h = pl.BlockSpec((tile_t, H), lambda i: (i, 0))
    row_sr = pl.BlockSpec((tile_t, SR), lambda i: (i, 0))
    row_idx = pl.BlockSpec((tile_t, 1), lambda i: (i, 0))
    # VMEM-resident: constant index_map -> DMA'd once, never re-fetched
    resident = lambda shape: pl.BlockSpec(shape, lambda i: (0, 0))
    smem = pl.BlockSpec(memory_space=pltpu.MemorySpace.SMEM)

    mm_bytes = jnp.dtype(matmul_dtype).itemsize
    flops = 2 * T * (2 * E_pad * H + SR * H + 4 * H * H)
    bytes_accessed = (T * (H * area.dtype.itemsize + SR * sbf.dtype.itemsize
                           + 2 * 4 + H * jnp.dtype(out_dtype).itemsize)
                      + E_pad * H * e.dtype.itemsize
                      + (SR * H + 4 * H * H) * mm_bytes + 2 * H * 4 + 8)
    cost = pl.CostEstimate(flops=flops, transcendentals=3 * T * H,
                           bytes_accessed=bytes_accessed)

    kernel = functools.partial(init_p_kernel, matmul_dtype=matmul_dtype)

    p = pl.pallas_call(
        kernel,
        out_shape=jax.ShapeDtypeStruct((T, H), out_dtype),
        grid=grid,
        in_specs=[smem, smem,
                  row_idx, row_idx, row_h, row_sr,
                  resident((E_pad, H)),
                  resident((SR, H)), resident((1, H)),
                  resident((4 * H, H)), resident((1, H))],
        out_specs=row_h,
        scratch_shapes=[pltpu.VMEM((tile_t, 4 * H), matmul_dtype)],
        compiler_params=pltpu.CompilerParams(
            dimension_semantics=("parallel",),
            vmem_limit_bytes=32 * 1024 * 1024),   # v7x-safe (64 MiB physical)
        cost_estimate=cost,
    )(w1, b1, idx_ji2, idx_kj2, area, sbf, e, w_sbf, b_sbf, w_lin, b_lin)

    return p, 1


def _reference(e, idx_ji, idx_kj, area, sbf, params):
    """Plain-JAX (f32) reference for sanity checking."""
    area_a = _swish(area * params["weight1"][0] + params["bias1"][0])
    sbf0 = _swish(sbf @ params["w_sbf"] + params["b_sbf"])
    x = jnp.concatenate([e[idx_ji], e[idx_kj], area_a, sbf0], axis=-1)
    return _swish(x @ params["w_lin"] + params["b_lin"])


if __name__ == "__main__":
    # small shapes consistent with the module
    num_spherical = 2
    num_radial = 8
    hidden_channels = 32          # H
    SR = num_spherical * num_radial
    E = 12                        # number of edges (rows of e)
    T = 40                        # number of triplets (ragged vs any tile)

    key = jax.random.PRNGKey(0)
    k = jax.random.split(key, 8)

    e = jax.random.normal(k[0], (E, hidden_channels), dtype=jnp.float32)
    area = jax.random.normal(k[1], (T, hidden_channels), dtype=jnp.float32)
    sbf = jax.random.normal(k[2], (T, SR), dtype=jnp.float32)
    idx_ji = jax.random.randint(k[3], (T,), 0, E, dtype=jnp.int32)
    idx_kj = jax.random.randint(k[4], (T,), 0, E, dtype=jnp.int32)

    # deterministic parameter init (weights stored as [in, out])
    params = {
        "weight1": jnp.array([1.0], dtype=jnp.float32),   # as in reset_parameters
        "bias1": jnp.array([0.0], dtype=jnp.float32),
        "w_sbf": 0.1 * jax.random.normal(k[5], (SR, hidden_channels),
                                         dtype=jnp.float32),
        "b_sbf": jnp.zeros((hidden_channels,), dtype=jnp.float32),
        "w_lin": 0.1 * jax.random.normal(k[6], (4 * hidden_channels,
                                                hidden_channels),
                                         dtype=jnp.float32),
        "b_lin": 0.05 * jax.random.normal(k[7], (hidden_channels,),
                                          dtype=jnp.float32),
    }

    ref = _reference(e, idx_ji, idx_kj, area, sbf, params)

    # exact path: f32 streams + f32 matmuls, multi-tile ragged grid (3 steps)
    p32, one = init_p_forward(e, idx_ji, idx_kj, area, sbf, params,
                              max_tile_t=16, matmul_dtype=jnp.float32)
    p32 = jax.block_until_ready(p32)
    assert p32.shape == (T, hidden_channels)
    assert one == 1
    assert jnp.allclose(p32, ref, atol=1e-5, rtol=1e-5), "f32 mismatch vs reference"

    # fast path: bf16 stored upstream -> bf16 HBM streams, bf16 MXU operands
    # with f32 accumulate, bf16 output.  (bf16 rounds the e pass-through
    # contributions vs the f32 PyTorch reference -- acceptable at this tol.)
    e_b = e.astype(jnp.bfloat16)
    area_b = area.astype(jnp.bfloat16)
    sbf_b = sbf.astype(jnp.bfloat16)
    pbf, _ = init_p_forward(e_b, idx_ji, idx_kj, area_b, sbf_b, params,
                            matmul_dtype=jnp.bfloat16)
    pbf = jax.block_until_ready(pbf)
    assert pbf.shape == (T, hidden_channels)
    assert jnp.allclose(pbf.astype(jnp.float32), ref, atol=1e-1, rtol=1e-1), \
        "bf16 mismatch vs reference"

    print("KERNEL_OK")
</pallas_src>

<mosaic_0001>
module attributes {stable_mosaic.version = 11 : i64} {
  func.func @init_p_kernel(%arg0: i32, %arg1: memref<1x1xf32, #tpu.memory_space<smem>>, %arg2: memref<1x1xf32, #tpu.memory_space<smem>>, %arg3: memref<16x1xi32, #tpu.memory_space<vmem>>, %arg4: memref<16x1xi32, #tpu.memory_space<vmem>>, %arg5: memref<16x32xf32, #tpu.memory_space<vmem>>, %arg6: memref<16x16xf32, #tpu.memory_space<vmem>>, %arg7: memref<16x32xf32, #tpu.memory_space<vmem>>, %arg8: memref<16x32xf32, #tpu.memory_space<vmem>>, %arg9: memref<1x32xf32, #tpu.memory_space<vmem>>, %arg10: memref<128x32xf32, #tpu.memory_space<vmem>>, %arg11: memref<1x32xf32, #tpu.memory_space<vmem>>, %arg12: memref<16x32xf32, #tpu.memory_space<vmem>>, %arg13: memref<16x128xf32, #tpu.memory_space<vmem>>) attributes {dimension_semantics = [#tpu.dimension_semantics<parallel>], iteration_bounds = array<i64: 3>, scalar_prefetch = 0 : i64, scratch_operands = 1 : i64, tpu.core_type = #tpu.core_type<tc>, window_params = [{transform_indices = @transform_0, window_bounds = array<i64: 1, 1>}, {transform_indices = @transform_1, window_bounds = array<i64: 1, 1>}, {transform_indices = @transform_2, window_bounds = array<i64: 16, 1>}, {transform_indices = @transform_3, window_bounds = array<i64: 16, 1>}, {transform_indices = @transform_4, window_bounds = array<i64: 16, 32>}, {transform_indices = @transform_5, window_bounds = array<i64: 16, 16>}, {pipeline_mode = #tpu.pipeline_mode<synchronous>, transform_indices = @transform_6, window_bounds = array<i64: 16, 32>}, {pipeline_mode = #tpu.pipeline_mode<synchronous>, transform_indices = @transform_7, window_bounds = array<i64: 16, 32>}, {pipeline_mode = #tpu.pipeline_mode<synchronous>, transform_indices = @transform_8, window_bounds = array<i64: 1, 32>}, {pipeline_mode = #tpu.pipeline_mode<synchronous>, transform_indices = @transform_9, window_bounds = array<i64: 128, 32>}, {pipeline_mode = #tpu.pipeline_mode<synchronous>, transform_indices = @transform_10, window_bounds = array<i64: 1, 32>}, {transform_indices = @transform_11, window_bounds = array<i64: 16, 32>}]} {
    %c0 = arith.constant 0 : index
    %c0_0 = arith.constant 0 : index
    %0 = memref.load %arg1[%c0, %c0_0] : memref<1x1xf32, #tpu.memory_space<smem>>
    %c0_1 = arith.constant 0 : index
    %c0_2 = arith.constant 0 : index
    %1 = memref.load %arg2[%c0_1, %c0_2] : memref<1x1xf32, #tpu.memory_space<smem>>
    %c0_3 = arith.constant 0 : index
    %c0_4 = arith.constant 0 : index
    %2 = vector.load %arg7[%c0_3, %c0_4] : memref<16x32xf32, #tpu.memory_space<vmem>>, vector<16x32xf32>
    %3 = tpu.iota {dimensions = array<i32: 1>} : vector<16x16xi32>
    %c0_5 = arith.constant 0 : index
    %c0_6 = arith.constant 0 : index
    %4 = vector.load %arg3[%c0_5, %c0_6] : memref<16x1xi32, #tpu.memory_space<vmem>>, vector<16x1xi32>
    %5 = vector.broadcast %4 : vector<16x1xi32> to vector<16x16xi32>
    %6 = arith.cmpi eq, %3, %5 : vector<16x16xi32>
    %7 = arith.extui %6 : vector<16x16xi1> to vector<16x16xi32>
    %8 = arith.sitofp %7 : vector<16x16xi32> to vector<16x16xf32>
    %c0_7 = arith.constant 0 : index
    %c0_8 = arith.constant 0 : index
    %9 = vector.load %arg4[%c0_7, %c0_8] : memref<16x1xi32, #tpu.memory_space<vmem>>, vector<16x1xi32>
    %10 = vector.broadcast %9 : vector<16x1xi32> to vector<16x16xi32>
    %11 = arith.cmpi eq, %3, %10 : vector<16x16xi32>
    %12 = arith.extui %11 : vector<16x16xi1> to vector<16x16xi32>
    %13 = arith.sitofp %12 : vector<16x16xi32> to vector<16x16xf32>
    %cst = arith.constant dense<0.000000e+00> : vector<16x32xf32>
    %14 = tpu.matmul %8, %2, %cst {dimension_numbers = #tpu.dot_dimension_numbers<[1], [0], [0], [1], [0, 0, 1, 1], [], []>} : vector<16x16xf32>, vector<16x32xf32>, vector<16x32xf32> -> vector<16x32xf32>
    %c0_9 = arith.constant 0 : index
    %c0_10 = arith.constant 0 : index
    %15 = vector.load %arg13[%c0_9, %c0_10] : memref<16x128xf32, #tpu.memory_space<vmem>>, vector<16x32xf32>
    tpu.vector_store %arg13[%c0_9, %c0_10], %14 {strides = array<i32>} : memref<16x128xf32, #tpu.memory_space<vmem>>, vector<16x32xf32>,
    %cst_11 = arith.constant dense<0.000000e+00> : vector<16x32xf32>
    %16 = tpu.matmul %13, %2, %cst_11 {dimension_numbers = #tpu.dot_dimension_numbers<[1], [0], [0], [1], [0, 0, 1, 1], [], []>} : vector<16x16xf32>, vector<16x32xf32>, vector<16x32xf32> -> vector<16x32xf32>
    %c0_12 = arith.constant 0 : index
    %c32 = arith.constant 32 : index
    %17 = vector.load %arg13[%c0_12, %c32] : memref<16x128xf32, #tpu.memory_space<vmem>>, vector<16x32xf32>
    tpu.vector_store %arg13[%c0_12, %c32], %16 {strides = array<i32>} : memref<16x128xf32, #tpu.memory_space<vmem>>, vector<16x32xf32>,
    %c0_13 = arith.constant 0 : index
    %c0_14 = arith.constant 0 : index
    %18 = vector.load %arg5[%c0_13, %c0_14] : memref<16x32xf32, #tpu.memory_space<vmem>>, vector<16x32xf32>
    %19 = vector.broadcast %0 : f32 to vector<16x32xf32>
    %20 = arith.mulf %18, %19 : vector<16x32xf32>
    %21 = vector.broadcast %1 : f32 to vector<16x32xf32>
    %22 = arith.addf %20, %21 : vector<16x32xf32>
    %c0_15 = arith.constant 0 : index
    %c0_16 = arith.constant 0 : index
    %23 = vector.load %arg6[%c0_15, %c0_16] : memref<16x16xf32, #tpu.memory_space<vmem>>, vector<16x16xf32>
    %c0_17 = arith.constant 0 : index
    %c0_18 = arith.constant 0 : index
    %24 = vector.load %arg8[%c0_17, %c0_18] : memref<16x32xf32, #tpu.memory_space<vmem>>, vector<16x32xf32>
    %cst_19 = arith.constant dense<0.000000e+00> : vector<16x32xf32>
    %25 = tpu.matmul %23, %24, %cst_19 {dimension_numbers = #tpu.dot_dimension_numbers<[1], [0], [0], [1], [0, 0, 1, 1], [], []>} : vector<16x16xf32>, vector<16x32xf32>, vector<16x32xf32> -> vector<16x32xf32>
    %c0_20 = arith.constant 0 : index
    %c0_21 = arith.constant 0 : index
    %26 = vector.load %arg9[%c0_20, %c0_21] : memref<1x32xf32, #tpu.memory_space<vmem>>, vector<1x32xf32>
    %27 = vector.broadcast %26 : vector<1x32xf32> to vector<16x32xf32>
    %28 = arith.addf %25, %27 : vector<16x32xf32>
    %29 = tpu.concatenate %22, %28 in 1 : vector<16x32xf32>, vector<16x32xf32> -> vector<16x64xf32>
    %30 = arith.negf %29 : vector<16x64xf32>
    %31 = math.exp %30 : vector<16x64xf32>
    %cst_22 = arith.constant 1.000000e+00 : f32
    %32 = vector.broadcast %cst_22 : f32 to vector<16x64xf32>
    %33 = arith.addf %32, %31 : vector<16x64xf32>
    %34 = arith.divf %32, %33 : vector<16x64xf32>
    %35 = arith.mulf %29, %34 : vector<16x64xf32>
    %c0_23 = arith.constant 0 : index
    %c64 = arith.constant 64 : index
    %36 = vector.load %arg13[%c0_23, %c64] : memref<16x128xf32, #tpu.memory_space<vmem>>, vector<16x64xf32>
    tpu.vector_store %arg13[%c0_23, %c64], %35 {strides = array<i32>} : memref<16x128xf32, #tpu.memory_space<vmem>>, vector<16x64xf32>,
    %c0_24 = arith.constant 0 : index
    %c0_25 = arith.constant 0 : index
    %37 = vector.load %arg13[%c0_24, %c0_25] : memref<16x128xf32, #tpu.memory_space<vmem>>, vector<16x128xf32>
    %c0_26 = arith.constant 0 : index
    %c0_27 = arith.constant 0 : index
    %38 = vector.load %arg10[%c0_26, %c0_27] : memref<128x32xf32, #tpu.memory_space<vmem>>, vector<128x32xf32>
    %cst_28 = arith.constant dense<0.000000e+00> : vector<16x32xf32>
    %39 = tpu.matmul %37, %38, %cst_28 {dimension_numbers = #tpu.dot_dimension_numbers<[1], [0], [0], [1], [0, 0, 1, 1], [], []>} : vector<16x128xf32>, vector<128x32xf32>, vector<16x32xf32> -> vector<16x32xf32>
    %c0_29 = arith.constant 0 : index
    %c0_30 = arith.constant 0 : index
    %40 = vector.load %arg11[%c0_29, %c0_30] : memref<1x32xf32, #tpu.memory_space<vmem>>, vector<1x32xf32>
    %41 = vector.broadcast %40 : vector<1x32xf32> to vector<16x32xf32>
    %42 = arith.addf %39, %41 : vector<16x32xf32>
    %43 = arith.negf %42 : vector<16x32xf32>
    %44 = math.exp %43 : vector<16x32xf32>
    %cst_31 = arith.constant 1.000000e+00 : f32
    %45 = vector.broadcast %cst_31 : f32 to vector<16x32xf32>
    %46 = arith.addf %45, %44 : vector<16x32xf32>
    %47 = arith.divf %45, %46 : vector<16x32xf32>
    %48 = arith.mulf %42, %47 : vector<16x32xf32>
    %c0_32 = arith.constant 0 : index
    %c0_33 = arith.constant 0 : index
    %49 = vector.load %arg12[%c0_32, %c0_33] : memref<16x32xf32, #tpu.memory_space<vmem>>, vector<16x32xf32>
    tpu.vector_store %arg12[%c0_32, %c0_33], %48 {strides = array<i32>} : memref<16x32xf32, #tpu.memory_space<vmem>>, vector<16x32xf32>,
    return
  }
  func.func @transform_0(%arg0: i32) -> (i32, i32) {
    %c0_i32 = arith.constant 0 : i32
    %c0_i32_0 = arith.constant 0 : i32
    %c0_i32_1 = arith.constant 0 : i32
    return %c0_i32, %c0_i32_0 : i32, i32
  }
  func.func @transform_1(%arg0: i32) -> (i32, i32) {
    %c0_i32 = arith.constant 0 : i32
    %c0_i32_0 = arith.constant 0 : i32
    %c0_i32_1 = arith.constant 0 : i32
    return %c0_i32, %c0_i32_0 : i32, i32
  }
  func.func @transform_2(%arg0: i32) -> (i32, i32) {
    %c0_i32 = arith.constant 0 : i32
    %c0_i32_0 = arith.constant 0 : i32
    return %arg0, %c0_i32 : i32, i32
  }
  func.func @transform_3(%arg0: i32) -> (i32, i32) {
    %c0_i32 = arith.constant 0 : i32
    %c0_i32_0 = arith.constant 0 : i32
    return %arg0, %c0_i32 : i32, i32
  }
  func.func @transform_4(%arg0: i32) -> (i32, i32) {
    %c0_i32 = arith.constant 0 : i32
    %c0_i32_0 = arith.constant 0 : i32
    return %arg0, %c0_i32 : i32, i32
  }
  func.func @transform_5(%arg0: i32) -> (i32, i32) {
    %c0_i32 = arith.constant 0 : i32
    %c0_i32_0 = arith.constant 0 : i32
    return %arg0, %c0_i32 : i32, i32
  }
  func.func @transform_6(%arg0: i32) -> (i32, i32) {
    %c0_i32 = arith.constant 0 : i32
    %c0_i32_0 = arith.constant 0 : i32
    %c0_i32_1 = arith.constant 0 : i32
    return %c0_i32, %c0_i32_0 : i32, i32
  }
  func.func @transform_7(%arg0: i32) -> (i32, i32) {
    %c0_i32 = arith.constant 0 : i32
    %c0_i32_0 = arith.constant 0 : i32
    %c0_i32_1 = arith.constant 0 : i32
    return %c0_i32, %c0_i32_0 : i32, i32
  }
  func.func @transform_8(%arg0: i32) -> (i32, i32) {
    %c0_i32 = arith.constant 0 : i32
    %c0_i32_0 = arith.constant 0 : i32
    %c0_i32_1 = arith.constant 0 : i32
    return %c0_i32, %c0_i32_0 : i32, i32
  }
  func.func @transform_9(%arg0: i32) -> (i32, i32) {
    %c0_i32 = arith.constant 0 : i32
    %c0_i32_0 = arith.constant 0 : i32
    %c0_i32_1 = arith.constant 0 : i32
    return %c0_i32, %c0_i32_0 : i32, i32
  }
  func.func @transform_10(%arg0: i32) -> (i32, i32) {
    %c0_i32 = arith.constant 0 : i32
    %c0_i32_0 = arith.constant 0 : i32
    %c0_i32_1 = arith.constant 0 : i32
    return %c0_i32, %c0_i32_0 : i32, i32
  }
  func.func @transform_11(%arg0: i32) -> (i32, i32) {
    %c0_i32 = arith.constant 0 : i32
    %c0_i32_0 = arith.constant 0 : i32
    return %arg0, %c0_i32 : i32, i32
  }
}

</mosaic_0001>

<llo_original>
// kernel: tpu_custom_call.1
$region0: #{tpu_custom_call.1}
  #allocation0 [shape = 'u32[]', space=smem, size = 0x4, offset = 0x4, fixed_abs, tag = 'smem constant byte address 0x4 - core index']
  #allocation1 [shape = 'u32[144,128]{1,0:T(1,128)}', space=vmem, size = 0x12000, scoped, tag = 'internal scratch']
  #allocation2 [shape = 'f32[16,128]{1,0:T(8,128)}', space=vmem, size = 0x2000, scoped, tag = 'scratch operand']
  #allocation3 [shape = 'f32[1,1]{1,0:T(1,128)S(6)}', space=smem, size = 0x200, scoped, tag = 'scoped memory for tpu_custom_call.1']
  #allocation4 [shape = 'f32[1,1]{1,0:T(1,128)S(6)}', space=smem, size = 0x200, scoped, tag = 'scoped memory for tpu_custom_call.1']
  %s0 = inlined_call_operand.<no memory space> [shape: f32[1,1], index: 0, kind: input, shape index: {}]
  %s1 = inlined_call_operand.<no memory space> [shape: f32[1,1], index: 1, kind: input, shape index: {}]
  %s2 = inlined_call_operand.vmem [shape: s32[40,1], index: 2, kind: input, shape index: {}]
  %s3 = inlined_call_operand.vmem [shape: s32[40,1], index: 3, kind: input, shape index: {}]
  %s4 = inlined_call_operand.vmem [shape: f32[40,32], index: 4, kind: input, shape index: {}]
  %s5 = inlined_call_operand.vmem [shape: f32[40,16], index: 5, kind: input, shape index: {}]
  %s6 = inlined_call_operand.vmem [shape: f32[16,32], index: 6, kind: input, shape index: {}]
  %s7 = inlined_call_operand.vmem [shape: f32[16,32], index: 7, kind: input, shape index: {}]
  %s8 = inlined_call_operand.vmem [shape: f32[1,32], index: 8, kind: input, shape index: {}]
  %s9 = inlined_call_operand.vmem [shape: f32[128,32], index: 9, kind: input, shape index: {}]
  %s10 = inlined_call_operand.vmem [shape: f32[1,32], index: 10, kind: input, shape index: {}]
  %s11 = inlined_call_operand.vmem [shape: f32[40,32], index: 11, kind: output, shape index: {}]
  %s12 = sld [smem:[#allocation0]]
  $region125: #{tpu_custom_call.1} parent=0
    _
  %s14 = ssub.s32 1, %s12
  %s15 = scalar_select 0, %s14, %s12
  %16 = sst [smem:[#allocation3]] %s0
  %17 = sst [smem:[#allocation4]] %s1
  $region1: #{tpu_custom_call.1} parent=0
    #allocation5 [shape = 'u8[16384]{0}', space=vmem, size = 0x4000, scoped, tag = 'output window, operand 0']
    loop: start=0, step=1, limit=5
    $region2: #{tpu_custom_call.1} parent=1 // loop_pre_header
      _
    $region3: #{tpu_custom_call.1} parent=1 // loop_header
      %s19 = sphi 0, %s23
      %p20 = scmp.ge.s32.totalorder %s19, 5
      %s27 = sphi 0, %s27
      %s29 = sphi 0, %s27
      %s30 = sphi 0, %s29
      %s44 = sphi 0, %s30
      %s48 = sphi 0, %s48
      %s50 = sphi 0, %s48
      %s51 = sphi 0, %s50
      %s65 = sphi 0, %s51
      %s71 = sphi 0, %s73
      %s74 = sphi 0, %s71
      %s75 = sphi 0, %s74
      %s91 = sphi 0, %s75
      %s97 = sphi 0, %s99
      %s100 = sphi 0, %s97
      %s101 = sphi 0, %s100
      %s117 = sphi 0, %s101
      %s123 = sphi 0, %s125
      %s126 = sphi 0, %s123
      %s127 = sphi 0, %s126
      %s143 = sphi 0, %s127
      %s149 = sphi 0, %s151
      %s152 = sphi 0, %s149
      %s153 = sphi 0, %s152
      %s169 = sphi 0, %s153
      %s173 = sphi 0, %s173
      %s175 = sphi 0, %s173
      %s176 = sphi 0, %s175
      %s190 = sphi 0, %s176
      %s194 = sphi 0, %s194
      %s196 = sphi 0, %s194
      %s197 = sphi 0, %s196
      %s211 = sphi 0, %s197
      %s215 = sphi 0, %s215
      %s217 = sphi 0, %s215
      %s218 = sphi 0, %s217
      %s232 = sphi 0, %s218
      %s236 = sphi 0, %s236
      %s238 = sphi 0, %s236
      %s239 = sphi 0, %s238
      %s253 = sphi 0, %s239
      %s257 = sphi 0, %s257
      %s259 = sphi 0, %s257
      %s260 = sphi 0, %s259
      %s274 = sphi 0, %s260
      %s280 = sphi 0, %s282
      %s283 = sphi 0, %s280
      %s284 = sphi 0, %s283
      %s300 = sphi 0, %s284
    $region4: #{tpu_custom_call.1} parent=1 // loop_header_branch
      %22 = sbr.rel (%p20) target = $region8
    $region5: #{tpu_custom_call.1} parent=1 // loop_body
      %s24 = ssub.s32 %s19, 1
      %s25 = ssub.s32 %s19, 2
      %s26 = sadd.s32 %s19, 1
      %s28 = sadd.s32 %s27, 1
      %p31 = scmp.eq.s32.totalorder %s19, 2
      %p32 = scmp.ne.s32.totalorder %s27, %s29
      %p33 = scmp.eq.s32.totalorder %s19, 0
      %p34 = por %p32, %p33
      %p35 = scmp.ne.s32.totalorder %s27, %s29
      %p36 = scmp.eq.s32.totalorder %s24, 2
      %p37 = por %p35, %p36
      %p38 = scmp.ne.s32.totalorder %s29, %s30
      %p39 = scmp.eq.s32.totalorder %s24, 0
      %p40 = por %p38, %p39
      %p41 = scmp.ne.s32.totalorder %s29, %s30
      %p42 = scmp.eq.s32.totalorder %s25, 2
      %p43 = por %p41, %p42
      %p45 = scmp.ne.s32.totalorder %s30, %s44
      %p46 = scmp.eq.s32.totalorder %s25, 0
      %p47 = por %p45, %p46
      %s49 = sadd.s32 %s48, 1
      %p52 = scmp.eq.s32.totalorder %s19, 2
      %p53 = scmp.ne.s32.totalorder %s48, %s50
      %p54 = scmp.eq.s32.totalorder %s19, 0
      %p55 = por %p53, %p54
      %p56 = scmp.ne.s32.totalorder %s48, %s50
      %p57 = scmp.eq.s32.totalorder %s24, 2
      %p58 = por %p56, %p57
      %p59 = scmp.ne.s32.totalorder %s50, %s51
      %p60 = scmp.eq.s32.totalorder %s24, 0
      %p61 = por %p59, %p60
      %p62 = scmp.ne.s32.totalorder %s50, %s51
      %p63 = scmp.eq.s32.totalorder %s25, 2
      %p64 = por %p62, %p63
      %p66 = scmp.ne.s32.totalorder %s51, %s65
      %p67 = scmp.eq.s32.totalorder %s25, 0
      %p68 = por %p66, %p67
      %s69 = ssub.s32 %s19, %s26
      %p70 = scmp.eq.s32.totalorder %s69, 0
      %s72 = sadd.s32 %s71, 1
      %s73 = scalar_select %p70, %s71, %s72
      %p76 = pneg %p70
      %p77 = scmp.eq.s32.totalorder %s19, 2
      %p78 = por %p76, %p77
      %p79 = scmp.ne.s32.totalorder %s71, %s74
      %p80 = scmp.eq.s32.totalorder %s19, 0
      %p81 = por %p79, %p80
      %p82 = scmp.ne.s32.totalorder %s71, %s74
      %p83 = scmp.eq.s32.totalorder %s24, 2
      %p84 = por %p82, %p83
      %p85 = scmp.ne.s32.totalorder %s74, %s75
      %p86 = scmp.eq.s32.totalorder %s24, 0
      %p87 = por %p85, %p86
      %p88 = scmp.ne.s32.totalorder %s74, %s75
      %p89 = scmp.eq.s32.totalorder %s25, 2
      %p90 = por %p88, %p89
      %p92 = scmp.ne.s32.totalorder %s75, %s91
      %p93 = scmp.eq.s32.totalorder %s25, 0
      %p94 = por %p92, %p93
      %s95 = ssub.s32 %s19, %s26
      %p96 = scmp.eq.s32.totalorder %s95, 0
      %s98 = sadd.s32 %s97, 1
      %s99 = scalar_select %p96, %s97, %s98
      %p102 = pneg %p96
      %p103 = scmp.eq.s32.totalorder %s19, 2
      %p104 = por %p102, %p103
      %p105 = scmp.ne.s32.totalorder %s97, %s100
      %p106 = scmp.eq.s32.totalorder %s19, 0
      %p107 = por %p105, %p106
      %p108 = scmp.ne.s32.totalorder %s97, %s100
      %p109 = scmp.eq.s32.totalorder %s24, 2
      %p110 = por %p108, %p109
      %p111 = scmp.ne.s32.totalorder %s100, %s101
      %p112 = scmp.eq.s32.totalorder %s24, 0
      %p113 = por %p111, %p112
      %p114 = scmp.ne.s32.totalorder %s100, %s101
      %p115 = scmp.eq.s32.totalorder %s25, 2
      %p116 = por %p114, %p115
      %p118 = scmp.ne.s32.totalorder %s101, %s117
      %p119 = scmp.eq.s32.totalorder %s25, 0
      %p120 = por %p118, %p119
      %s121 = ssub.s32 %s19, %s26
      %p122 = scmp.eq.s32.totalorder %s121, 0
      %s124 = sadd.s32 %s123, 1
      %s125 = scalar_select %p122, %s123, %s124
      %p128 = pneg %p122
      %p129 = scmp.eq.s32.totalorder %s19, 2
      %p130 = por %p128, %p129
      %p131 = scmp.ne.s32.totalorder %s123, %s126
      %p132 = scmp.eq.s32.totalorder %s19, 0
      %p133 = por %p131, %p132
      %p134 = scmp.ne.s32.totalorder %s123, %s126
      %p135 = scmp.eq.s32.totalorder %s24, 2
      %p136 = por %p134, %p135
      %p137 = scmp.ne.s32.totalorder %s126, %s127
      %p138 = scmp.eq.s32.totalorder %s24, 0
      %p139 = por %p137, %p138
      %p140 = scmp.ne.s32.totalorder %s126, %s127
      %p141 = scmp.eq.s32.totalorder %s25, 2
      %p142 = por %p140, %p141
      %p144 = scmp.ne.s32.totalorder %s127, %s143
      %p145 = scmp.eq.s32.totalorder %s25, 0
      %p146 = por %p144, %p145
      %s147 = ssub.s32 %s19, %s26
      %p148 = scmp.eq.s32.totalorder %s147, 0
      %s150 = sadd.s32 %s149, 1
      %s151 = scalar_select %p148, %s149, %s150
      %p154 = pneg %p148
      %p155 = scmp.eq.s32.totalorder %s19, 2
      %p156 = por %p154, %p155
      %p157 = scmp.ne.s32.totalorder %s149, %s152
      %p158 = scmp.eq.s32.totalorder %s19, 0
      %p159 = por %p157, %p158
      %p160 = scmp.ne.s32.totalorder %s149, %s152
      %p161 = scmp.eq.s32.totalorder %s24, 2
      %p162 = por %p160, %p161
      %p163 = scmp.ne.s32.totalorder %s152, %s153
      %p164 = scmp.eq.s32.totalorder %s24, 0
      %p165 = por %p163, %p164
      %p166 = scmp.ne.s32.totalorder %s152, %s153
      %p167 = scmp.eq.s32.totalorder %s25, 2
      %p168 = por %p166, %p167
      %p170 = scmp.ne.s32.totalorder %s153, %s169
      %p171 = scmp.eq.s32.totalorder %s25, 0
      %p172 = por %p170, %p171
      %s174 = sadd.s32 %s173, 1
      %p177 = scmp.eq.s32.totalorder %s19, 2
      %p178 = scmp.ne.s32.totalorder %s173, %s175
      %p179 = scmp.eq.s32.totalorder %s19, 0
      %p180 = por %p178, %p179
      %p181 = scmp.ne.s32.totalorder %s173, %s175
      %p182 = scmp.eq.s32.totalorder %s24, 2
      %p183 = por %p181, %p182
      %p184 = scmp.ne.s32.totalorder %s175, %s176
      %p185 = scmp.eq.s32.totalorder %s24, 0
      %p186 = por %p184, %p185
      %p187 = scmp.ne.s32.totalorder %s175, %s176
      %p188 = scmp.eq.s32.totalorder %s25, 2
      %p189 = por %p187, %p188
      %p191 = scmp.ne.s32.totalorder %s176, %s190
      %p192 = scmp.eq.s32.totalorder %s25, 0
      %p193 = por %p191, %p192
      %s195 = sadd.s32 %s194, 1
      %p198 = scmp.eq.s32.totalorder %s19, 2
      %p199 = scmp.ne.s32.totalorder %s194, %s196
      %p200 = scmp.eq.s32.totalorder %s19, 0
      %p201 = por %p199, %p200
      %p202 = scmp.ne.s32.totalorder %s194, %s196
      %p203 = scmp.eq.s32.totalorder %s24, 2
      %p204 = por %p202, %p203
      %p205 = scmp.ne.s32.totalorder %s196, %s197
      %p206 = scmp.eq.s32.totalorder %s24, 0
      %p207 = por %p205, %p206
      %p208 = scmp.ne.s32.totalorder %s196, %s197
      %p209 = scmp.eq.s32.totalorder %s25, 2
      %p210 = por %p208, %p209
      %p212 = scmp.ne.s32.totalorder %s197, %s211
      %p213 = scmp.eq.s32.totalorder %s25, 0
      %p214 = por %p212, %p213
      %s216 = sadd.s32 %s215, 1
      %p219 = scmp.eq.s32.totalorder %s19, 2
      %p220 = scmp.ne.s32.totalorder %s215, %s217
      %p221 = scmp.eq.s32.totalorder %s19, 0
      %p222 = por %p220, %p221
      %p223 = scmp.ne.s32.totalorder %s215, %s217
      %p224 = scmp.eq.s32.totalorder %s24, 2
      %p225 = por %p223, %p224
      %p226 = scmp.ne.s32.totalorder %s217, %s218
      %p227 = scmp.eq.s32.totalorder %s24, 0
      %p228 = por %p226, %p227
      %p229 = scmp.ne.s32.totalorder %s217, %s218
      %p230 = scmp.eq.s32.totalorder %s25, 2
      %p231 = por %p229, %p230
      %p233 = scmp.ne.s32.totalorder %s218, %s232
      %p234 = scmp.eq.s32.totalorder %s25, 0
      %p235 = por %p233, %p234
      %s237 = sadd.s32 %s236, 1
      %p240 = scmp.eq.s32.totalorder %s19, 2
      %p241 = scmp.ne.s32.totalorder %s236, %s238
      %p242 = scmp.eq.s32.totalorder %s19, 0
      %p243 = por %p241, %p242
      %p244 = scmp.ne.s32.totalorder %s236, %s238
      %p245 = scmp.eq.s32.totalorder %s24, 2
      %p246 = por %p244, %p245
      %p247 = scmp.ne.s32.totalorder %s238, %s239
      %p248 = scmp.eq.s32.totalorder %s24, 0
      %p249 = por %p247, %p248
      %p250 = scmp.ne.s32.totalorder %s238, %s239
      %p251 = scmp.eq.s32.totalorder %s25, 2
      %p252 = por %p250, %p251
      %p254 = scmp.ne.s32.totalorder %s239, %s253
      %p255 = scmp.eq.s32.totalorder %s25, 0
      %p256 = por %p254, %p255
      %s258 = sadd.s32 %s257, 1
      %p261 = scmp.eq.s32.totalorder %s19, 2
      %p262 = scmp.ne.s32.totalorder %s257, %s259
      %p263 = scmp.eq.s32.totalorder %s19, 0
      %p264 = por %p262, %p263
      %p265 = scmp.ne.s32.totalorder %s257, %s259
      %p266 = scmp.eq.s32.totalorder %s24, 2
      %p267 = por %p265, %p266
      %p268 = scmp.ne.s32.totalorder %s259, %s260
      %p269 = scmp.eq.s32.totalorder %s24, 0
      %p270 = por %p268, %p269
      %p271 = scmp.ne.s32.totalorder %s259, %s260
      %p272 = scmp.eq.s32.totalorder %s25, 2
      %p273 = por %p271, %p272
      %p275 = scmp.ne.s32.totalorder %s260, %s274
      %p276 = scmp.eq.s32.totalorder %s25, 0
      %p277 = por %p275, %p276
      %s278 = ssub.s32 %s19, %s26
      %p279 = scmp.eq.s32.totalorder %s278, 0
      %s281 = sadd.s32 %s280, 1
      %s282 = scalar_select %p279, %s280, %s281
      %p285 = pneg %p279
      %p286 = scmp.eq.s32.totalorder %s19, 2
      %p287 = por %p285, %p286
      %p288 = scmp.ne.s32.totalorder %s280, %s283
      %p289 = scmp.eq.s32.totalorder %s19, 0
      %p290 = por %p288, %p289
      %p291 = scmp.ne.s32.totalorder %s280, %s283
      %p292 = scmp.eq.s32.totalorder %s24, 2
      %p293 = por %p291, %p292
      %p294 = scmp.ne.s32.totalorder %s283, %s284
      %p295 = scmp.eq.s32.totalorder %s24, 0
      %p296 = por %p294, %p295
      %p297 = scmp.ne.s32.totalorder %s283, %s284
      %p298 = scmp.eq.s32.totalorder %s25, 2
      %p299 = por %p297, %p298
      %p301 = scmp.ne.s32.totalorder %s284, %s300
      %p302 = scmp.eq.s32.totalorder %s25, 0
      %p303 = por %p301, %p302
      %p304 = scmp.le.s32.totalorder 1, %s19
      %p305 = scmp.lt.s32.totalorder %s19, 4
      %p306 = pnand %p304, %p305
      %p307 = pneg %p306
      // Predicated region
      $region9: #{tpu_custom_call.1} parent=5 // pred_check
        _
      $region10: #{tpu_custom_call.1} parent=5 // pred_check_branch
        %309 = sbr.rel (%p306) target = $region12
      $region11: #{tpu_custom_call.1} parent=5 // pred_region
        %s310 = ssub.s32 %s19, 1
        // Predicated region
        $region13: #{tpu_custom_call.1} parent=11 // pred_check
          %p311 = pneg %p40
        $region14: #{tpu_custom_call.1} parent=11 // pred_check_branch
          %313 = sbr.rel (%p311) target = $region16
        $region15: #{tpu_custom_call.1} parent=11 // pred_region
          _
        $region16: #{tpu_custom_call.1} parent=11 // pred_fallthru
          _
        // Predicated region
        $region17: #{tpu_custom_call.1} parent=11 // pred_check
          %p314 = pneg %p61
        $region18: #{tpu_custom_call.1} parent=11 // pred_check_branch
          %316 = sbr.rel (%p314) target = $region20
        $region19: #{tpu_custom_call.1} parent=11 // pred_region
          _
        $region20: #{tpu_custom_call.1} parent=11 // pred_fallthru
          _
        // Predicated region
        $region21: #{tpu_custom_call.1} parent=11 // pred_check
          %p317 = pneg %p186
        $region22: #{tpu_custom_call.1} parent=11 // pred_check_branch
          %319 = sbr.rel (%p317) target = $region24
        $region23: #{tpu_custom_call.1} parent=11 // pred_region
          _
        $region24: #{tpu_custom_call.1} parent=11 // pred_fallthru
          _
        // Predicated region
        $region25: #{tpu_custom_call.1} parent=11 // pred_check
          %p320 = pneg %p207
        $region26: #{tpu_custom_call.1} parent=11 // pred_check_branch
          %322 = sbr.rel (%p320) target = $region28
        $region27: #{tpu_custom_call.1} parent=11 // pred_region
          _
        $region28: #{tpu_custom_call.1} parent=11 // pred_fallthru
          _
        // Predicated region
        $region29: #{tpu_custom_call.1} parent=11 // pred_check
          %p323 = pneg %p228
        $region30: #{tpu_custom_call.1} parent=11 // pred_check_branch
          %325 = sbr.rel (%p323) target = $region32
        $region31: #{tpu_custom_call.1} parent=11 // pred_region
          _
        $region32: #{tpu_custom_call.1} parent=11 // pred_fallthru
          _
        // Predicated region
        $region33: #{tpu_custom_call.1} parent=11 // pred_check
          %p326 = pneg %p249
        $region34: #{tpu_custom_call.1} parent=11 // pred_check_branch
          %328 = sbr.rel (%p326) target = $region36
        $region35: #{tpu_custom_call.1} parent=11 // pred_region
          _
        $region36: #{tpu_custom_call.1} parent=11 // pred_fallthru
          _
        // Predicated region
        $region37: #{tpu_custom_call.1} parent=11 // pred_check
          %p329 = pneg %p270
        $region38: #{tpu_custom_call.1} parent=11 // pred_check_branch
          %331 = sbr.rel (%p329) target = $region40
        $region39: #{tpu_custom_call.1} parent=11 // pred_region
          _
        $region40: #{tpu_custom_call.1} parent=11 // pred_fallthru
          _
      $region12: #{tpu_custom_call.1} parent=5 // pred_fallthru
        _
      %p332 = scmp.lt.s32.totalorder %s19, 3
      // Predicated region
      $region41: #{tpu_custom_call.1} parent=5 // pred_check
        %p333 = pneg %p332
      $region42: #{tpu_custom_call.1} parent=5 // pred_check_branch
        %335 = sbr.rel (%p333) target = $region44
      $region43: #{tpu_custom_call.1} parent=5 // pred_region
        // Predicated region
        $region45: #{tpu_custom_call.1} parent=43 // pred_check
          %p336 = pneg %p81
        $region46: #{tpu_custom_call.1} parent=43 // pred_check_branch
          %338 = sbr.rel (%p336) target = $region48
        $region47: #{tpu_custom_call.1} parent=43 // pred_region
          %s339 = smul.u32 2, %s19
          %s340 = ssub.s32 5, %s339
          %p341 = scmp.lt.s32.totalorder %s340, 2
          %s342 = scalar_select %p341, %s340, 2
          %s343 = smul.u32 128, %s342
          %p344 = scmp.lt.s32.totalorder %s339, 4
          %s345 = scalar_select %p344, %s339, 4
          %s346 = smul.addr %s345, 8
          %s347 = scalar_lea.vmem %s2, %s346
          %s348 = smul.u32 2, %s19
          %s349 = ssub.s32 5, %s348
          %p350 = scmp.lt.s32.totalorder %s349, 2
          %s351 = scalar_select %p350, %s349, 2
          %s352 = smul.u32 128, %s351
        $region48: #{tpu_custom_call.1} parent=43 // pred_fallthru
          _
        // Predicated region
        $region49: #{tpu_custom_call.1} parent=43 // pred_check
          %p353 = pneg %p107
        $region50: #{tpu_custom_call.1} parent=43 // pred_check_branch
          %355 = sbr.rel (%p353) target = $region52
        $region51: #{tpu_custom_call.1} parent=43 // pred_region
          %s356 = smul.u32 2, %s19
          %s357 = ssub.s32 5, %s356
          %p358 = scmp.lt.s32.totalorder %s357, 2
          %s359 = scalar_select %p358, %s357, 2
          %s360 = smul.u32 128, %s359
          %p361 = scmp.lt.s32.totalorder %s356, 4
          %s362 = scalar_select %p361, %s356, 4
          %s363 = smul.addr %s362, 8
          %s364 = scalar_lea.vmem %s3, %s363
          %s365 = smul.u32 2, %s19
          %s366 = ssub.s32 5, %s365
          %p367 = scmp.lt.s32.totalorder %s366, 2
          %s368 = scalar_select %p367, %s366, 2
          %s369 = smul.u32 128, %s368
        $region52: #{tpu_custom_call.1} parent=43 // pred_fallthru
          _
        // Predicated region
        $region53: #{tpu_custom_call.1} parent=43 // pred_check
          %p370 = pneg %p133
        $region54: #{tpu_custom_call.1} parent=43 // pred_check_branch
          %372 = sbr.rel (%p370) target = $region56
        $region55: #{tpu_custom_call.1} parent=43 // pred_region
          %s373 = smul.u32 2, %s19
          %s374 = ssub.s32 5, %s373
          %p375 = scmp.lt.s32.totalorder %s374, 2
          %s376 = scalar_select %p375, %s374, 2
          %s377 = smul.u32 128, %s376
          %p378 = scmp.lt.s32.totalorder %s373, 4
          %s379 = scalar_select %p378, %s373, 4
          %s380 = smul.addr %s379, 8
          %s381 = scalar_lea.vmem %s4, %s380
          %s382 = smul.u32 2, %s19
          %s383 = ssub.s32 5, %s382
          %p384 = scmp.lt.s32.totalorder %s383, 2
          %s385 = scalar_select %p384, %s383, 2
          %s386 = smul.u32 128, %s385
        $region56: #{tpu_custom_call.1} parent=43 // pred_fallthru
          _
        // Predicated region
        $region57: #{tpu_custom_call.1} parent=43 // pred_check
          %p387 = pneg %p159
        $region58: #{tpu_custom_call.1} parent=43 // pred_check_branch
          %389 = sbr.rel (%p387) target = $region60
        $region59: #{tpu_custom_call.1} parent=43 // pred_region
          %s390 = smul.u32 2, %s19
          %s391 = ssub.s32 5, %s390
          %p392 = scmp.lt.s32.totalorder %s391, 2
          %s393 = scalar_select %p392, %s391, 2
          %s394 = smul.u32 128, %s393
          %p395 = scmp.lt.s32.totalorder %s390, 4
          %s396 = scalar_select %p395, %s390, 4
          %s397 = smul.addr %s396, 8
          %s398 = scalar_lea.vmem %s5, %s397
          %s399 = smul.u32 2, %s19
          %s400 = ssub.s32 5, %s399
          %p401 = scmp.lt.s32.totalorder %s400, 2
          %s402 = scalar_select %p401, %s400, 2
          %s403 = smul.u32 128, %s402
        $region60: #{tpu_custom_call.1} parent=43 // pred_fallthru
          _
      $region44: #{tpu_custom_call.1} parent=5 // pred_fallthru
        _
      %p404 = scmp.le.s32.totalorder 1, %s19
      %p405 = scmp.lt.s32.totalorder %s19, 4
      %p406 = pnand %p404, %p405
      %p407 = pneg %p406
      // Predicated region
      $region61: #{tpu_custom_call.1} parent=5 // pred_check
        _
      $region62: #{tpu_custom_call.1} parent=5 // pred_check_branch
        %409 = sbr.rel (%p406) target = $region64
      $region63: #{tpu_custom_call.1} parent=5 // pred_region
        %s410 = ssub.s32 %s19, 1
        %p411 = pneg %p40
        %p412 = pneg %p37
        %p413 = pneg %p61
        %p414 = pneg %p58
        %s415 = smul.u32 2, %s24
        %s416 = ssub.s32 5, %s415
        %p417 = scmp.lt.s32.totalorder %s416, 2
        %s418 = scalar_select %p417, %s416, 2
        %s419 = smul.u32 128, %s418
        %p420 = scmp.lt.s32.totalorder %s415, 4
        %s421 = scalar_select %p420, %s415, 4
        %s422 = smul.addr %s421, 8
        %s423 = scalar_lea.vmem %s2, %s422
        %p424 = pneg %p87
        %p425 = pneg %p84
        %s426 = smul.u32 2, %s24
        %s427 = ssub.s32 5, %s426
        %p428 = scmp.lt.s32.totalorder %s427, 2
        %s429 = scalar_select %p428, %s427, 2
        %s430 = smul.u32 128, %s429
        %p431 = scmp.lt.s32.totalorder %s426, 4
        %s432 = scalar_select %p431, %s426, 4
        %s433 = smul.addr %s432, 8
        %s434 = scalar_lea.vmem %s3, %s433
        %p435 = pneg %p113
        %p436 = pneg %p110
        %s437 = smul.u32 2, %s24
        %s438 = ssub.s32 5, %s437
        %p439 = scmp.lt.s32.totalorder %s438, 2
        %s440 = scalar_select %p439, %s438, 2
        %s441 = smul.u32 128, %s440
        %p442 = scmp.lt.s32.totalorder %s437, 4
        %s443 = scalar_select %p442, %s437, 4
        %s444 = smul.addr %s443, 8
        %s445 = scalar_lea.vmem %s4, %s444
        %p446 = pneg %p139
        %p447 = pneg %p136
        %s448 = smul.u32 2, %s24
        %s449 = ssub.s32 5, %s448
        %p450 = scmp.lt.s32.totalorder %s449, 2
        %s451 = scalar_select %p450, %s449, 2
        %s452 = smul.u32 128, %s451
        %p453 = scmp.lt.s32.totalorder %s448, 4
        %s454 = scalar_select %p453, %s448, 4
        %s455 = smul.addr %s454, 8
        %s456 = scalar_lea.vmem %s5, %s455
        %p457 = pneg %p165
        %p458 = pneg %p162
        %p459 = pneg %p186
        %p460 = pneg %p183
        %p461 = pneg %p207
        %p462 = pneg %p204
        %p463 = pneg %p228
        %p464 = pneg %p225
        %p465 = pneg %p249
        %p466 = pneg %p246
        %p467 = pneg %p270
        %p468 = pneg %p267
        %p469 = pneg %p296
        %p470 = pneg %p293
        %s471 = sand.u32 %s283, 1
        %s472 = sand.u32 %s283, 1
        %s473 = smul.addr %s472, 16
        %s474 = scalar_lea.vmem [#allocation5], %s473
        %s475 = smul.u32 2, %s24
        %s476 = ssub.s32 5, %s475
        %p477 = scmp.lt.s32.totalorder %s476, 2
        %s478 = scalar_select %p477, %s476, 2
        %s479 = smul.u32 128, %s478
        %p480 = scmp.lt.s32.totalorder %s475, 4
        %s481 = scalar_select %p480, %s475, 4
        %s482 = smul.addr %s481, 8
        %s483 = scalar_lea.vmem %s2, %s482
        %s484 = smul.u32 2, %s24
        %s485 = ssub.s32 5, %s484
        %p486 = scmp.lt.s32.totalorder %s485, 2
        %s487 = scalar_select %p486, %s485, 2
        %s488 = smul.u32 128, %s487
        %s489 = smul.u32 2, %s24
        %s490 = ssub.s32 5, %s489
        %p491 = scmp.lt.s32.totalorder %s490, 2
        %s492 = scalar_select %p491, %s490, 2
        %s493 = smul.u32 128, %s492
        %p494 = scmp.lt.s32.totalorder %s489, 4
        %s495 = scalar_select %p494, %s489, 4
        %s496 = smul.addr %s495, 8
        %s497 = scalar_lea.vmem %s3, %s496
        %s498 = smul.u32 2, %s24
        %s499 = ssub.s32 5, %s498
        %p500 = scmp.lt.s32.totalorder %s499, 2
        %s501 = scalar_select %p500, %s499, 2
        %s502 = smul.u32 128, %s501
        %s503 = smul.u32 2, %s24
        %s504 = ssub.s32 5, %s503
        %p505 = scmp.lt.s32.totalorder %s504, 2
        %s506 = scalar_select %p505, %s504, 2
        %s507 = smul.u32 128, %s506
        %p508 = scmp.lt.s32.totalorder %s503, 4
        %s509 = scalar_select %p508, %s503, 4
        %s510 = smul.addr %s509, 8
        %s511 = scalar_lea.vmem %s4, %s510
        %s512 = smul.u32 2, %s24
        %s513 = ssub.s32 5, %s512
        %p514 = scmp.lt.s32.totalorder %s513, 2
        %s515 = scalar_select %p514, %s513, 2
        %s516 = smul.u32 128, %s515
        %s517 = smul.u32 2, %s24
        %s518 = ssub.s32 5, %s517
        %p519 = scmp.lt.s32.totalorder %s518, 2
        %s520 = scalar_select %p519, %s518, 2
        %s521 = smul.u32 128, %s520
        %p522 = scmp.lt.s32.totalorder %s517, 4
        %s523 = scalar_select %p522, %s517, 4
        %s524 = smul.addr %s523, 8
        %s525 = scalar_lea.vmem %s5, %s524
        %s526 = smul.u32 2, %s24
        %s527 = ssub.s32 5, %s526
        %p528 = scmp.lt.s32.totalorder %s527, 2
        %s529 = scalar_select %p528, %s527, 2
        %s530 = smul.u32 128, %s529
        %s531 = smul.u32 2, %s24
        %s532 = ssub.s32 5, %s531
        %p533 = scmp.lt.s32.totalorder %s532, 2
        %s534 = scalar_select %p533, %s532, 2
        %s535 = smul.u32 128, %s534
        %s536 = sld [smem:[#allocation3]]
        %s537 = sld [smem:[#allocation4]]
        %v538 = vld [vmem:[%s6] sm:$0xff]
        %v539 = vld [vmem:[%s6 + $0x8] sm:$0xff]
        %v540 = vlaneseq
        %v541 = vand.u32 %v540, 127
        %v542 = vld [vmem:[%s483] sm:$0xff]
        %v543 = vld [vmem:[%s483 + $0x8] sm:$0xff]
        %544 = vset.pattern.permute.xlu0 0
        %545 = vperm.xlu0 %544, %v542
        %v546 = vpop.permute.xlu0 %545
        %547 = vset.pattern.permute.xlu0 0
        %548 = vperm.xlu0 %547, %v543
        %v549 = vpop.permute.xlu0 %548
        %vm550 = vcmp.eq.s32.totalorder %v541, %v546
        %vm551 = vcmp.eq.s32.totalorder %v541, %v549
        %v552 = vsel %vm550, 1, 0
        %v553 = vsel %vm551, 1, 0
        %v554 = vcvt.s32.f32 %v552
        %v555 = vcvt.s32.f32 %v553
        %v556 = vld [vmem:[%s497] sm:$0xff]
        %v557 = vld [vmem:[%s497 + $0x8] sm:$0xff]
        %558 = vset.pattern.permute.xlu0 0
        %559 = vperm.xlu0 %558, %v556
        %v560 = vpop.permute.xlu0 %559
        %561 = vset.pattern.permute.xlu0 0
        %562 = vperm.xlu0 %561, %v557
        %v563 = vpop.permute.xlu0 %562
        %vm564 = vcmp.eq.s32.totalorder %v541, %v560
        %vm565 = vcmp.eq.s32.totalorder %v541, %v563
        %v566 = vsel %vm564, 1, 0
        %v567 = vsel %vm565, 1, 0
        %v568 = vcvt.s32.f32 %v566
        %v569 = vcvt.s32.f32 %v567
        %vm570 = vcmask 130048
        %v572 = vsel %vm570, %v554, 0
        %v575 = vsel %vm570, %v555, 0
        %577 = vmatprep.subr.mxu0 0.0
        %578 = vmatpush1.msra.mxu0 %v538
        %579 = vmatprep.subr.mxu0 0.0
        %580 = vmatpush1.msra.mxu0 %v539
        %581 = vmatprep.subr.mxu0 0.0
        %582 = vmatpush1.msra.mxu0 0.0
        %583 = vmatprep.subr.mxu0 0.0
        %584 = vmatpush1.msra.mxu0 0.0
        %585 = vmatprep.subr.mxu0 0.0
        %586 = vmatpush1.msra.mxu0 0.0
        %587 = vmatprep.subr.mxu0 0.0
        %588 = vmatpush1.msra.mxu0 0.0
        %589 = vmatprep.subr.mxu0 0.0
        %590 = vmatpush1.msra.mxu0 0.0
        %591 = vmatprep.subr.mxu0 0.0
        %592 = vmatpush1.msra.mxu0 0.0
        %593 = vmatprep.subr.mxu0 0.0
        %594 = vmatpush1.msra.mxu0 0.0
        %595 = vmatprep.subr.mxu0 0.0
        %596 = vmatpush1.msra.mxu0 0.0
        %597 = vmatprep.subr.mxu0 0.0
        %598 = vmatpush1.msra.mxu0 0.0
        %599 = vmatprep.subr.mxu0 0.0
        %600 = vmatpush1.msra.mxu0 0.0
        %601 = vmatprep.subr.mxu0 0.0
        %602 = vmatpush1.msra.mxu0 0.0
        %603 = vmatprep.subr.mxu0 0.0
        %604 = vmatpush1.msra.mxu0 0.0
        %605 = vmatprep.subr.mxu0 0.0
        %606 = vmatpush1.msra.mxu0 0.0
        %607 = vmatprep.subr.mxu0 0.0
        %608 = vmatpush1.msra.mxu0 0.0
        %609 = vmatprep.subr.mxu0 0.0
        %610 = vmatpush1.msra.mxu0 0.0
        %611 = vmatprep.subr.mxu0 0.0
        %612 = vmatpush1.msra.mxu0 0.0
        %613 = vmatprep.subr.mxu0 0.0
        %614 = vmatpush1.msra.mxu0 0.0
        %615 = vmatprep.subr.mxu0 0.0
        %616 = vmatpush1.msra.mxu0 0.0
        %617 = vmatprep.subr.mxu0 0.0
        %618 = vmatpush1.msra.mxu0 0.0
        %619 = vmatprep.subr.mxu0 0.0
        %620 = vmatpush1.msra.mxu0 0.0
        %621 = vmatprep.subr.mxu0 0.0
        %622 = vmatpush1.msra.mxu0 0.0
        %623 = vmatprep.subr.mxu0 0.0
        %624 = vmatpush1.msra.mxu0 0.0
        %625 = vmatprep.subr.mxu0 0.0
        %626 = vmatpush1.msra.mxu0 0.0
        %627 = vmatprep.subr.mxu0 0.0
        %628 = vmatpush1.msra.mxu0 0.0
        %629 = vmatprep.subr.mxu0 0.0
        %630 = vmatpush1.msra.mxu0 0.0
        %631 = vmatprep.subr.mxu0 0.0
        %632 = vmatpush1.msra.mxu0 0.0
        %633 = vmatprep.subr.mxu0 0.0
        %634 = vmatpush1.msra.mxu0 0.0
        %635 = vmatprep.subr.mxu0 0.0
        %636 = vmatpush1.msra.mxu0 0.0
        %637 = vmatprep.subr.mxu0 0.0
        %638 = vmatpush1.msra.mxu0 0.0
        %639 = vmatprep.subr.mxu0 0.0
        %640 = vmatpush1.msra.mxu0 0.0
        %641 = vmatprep.mubr.f32.mxu0 0.0
        %642 = vmatmul.mubr.f32.gmra.mrb[0].mxu0 %v572
        %v643 = vpop.f32.mrb[0].mxu0
        %v644 = vadd.f32 0.0, %v643
        %v645 = vpop.f32.mrb[0].mxu0
        %646 = vmatprep.mubr.f32.mxu0 0.0
        %647 = vmatmul.mubr.f32.gmra.mrb[0].mxu0 %v575
        %v648 = vpop.f32.mrb[0].mxu0
        %v649 = vadd.f32 0.0, %v648
        %v650 = vpop.f32.mrb[0].mxu0
        %651 = vdwg.mxu0
        %vm652 = vcmask 261120
        %653 = vst.msk [vmem:[#allocation2] sm:$0xff] %vm652, %v644
        %654 = vst.msk [vmem:[#allocation2 + $0x8] sm:$0xff] %vm652, %v649
        %v656 = vsel %vm570, %v568, 0
        %v659 = vsel %vm570, %v569, 0
        %661 = vmatprep.subr.mxu0 0.0
        %662 = vmatpush1.msra.mxu0 %v538
        %663 = vmatprep.subr.mxu0 0.0
        %664 = vmatpush1.msra.mxu0 %v539
        %665 = vmatprep.subr.mxu0 0.0
        %666 = vmatpush1.msra.mxu0 0.0
        %667 = vmatprep.subr.mxu0 0.0
        %668 = vmatpush1.msra.mxu0 0.0
        %669 = vmatprep.subr.mxu0 0.0
        %670 = vmatpush1.msra.mxu0 0.0
        %671 = vmatprep.subr.mxu0 0.0
        %672 = vmatpush1.msra.mxu0 0.0
        %673 = vmatprep.subr.mxu0 0.0
        %674 = vmatpush1.msra.mxu0 0.0
        %675 = vmatprep.subr.mxu0 0.0
        %676 = vmatpush1.msra.mxu0 0.0
        %677 = vmatprep.subr.mxu0 0.0
        %678 = vmatpush1.msra.mxu0 0.0
        %679 = vmatprep.subr.mxu0 0.0
        %680 = vmatpush1.msra.mxu0 0.0
        %681 = vmatprep.subr.mxu0 0.0
        %682 = vmatpush1.msra.mxu0 0.0
        %683 = vmatprep.subr.mxu0 0.0
        %684 = vmatpush1.msra.mxu0 0.0
        %685 = vmatprep.subr.mxu0 0.0
        %686 = vmatpush1.msra.mxu0 0.0
        %687 = vmatprep.subr.mxu0 0.0
        %688 = vmatpush1.msra.mxu0 0.0
        %689 = vmatprep.subr.mxu0 0.0
        %690 = vmatpush1.msra.mxu0 0.0
        %691 = vmatprep.subr.mxu0 0.0
        %692 = vmatpush1.msra.mxu0 0.0
        %693 = vmatprep.subr.mxu0 0.0
        %694 = vmatpush1.msra.mxu0 0.0
        %695 = vmatprep.subr.mxu0 0.0
        %696 = vmatpush1.msra.mxu0 0.0
        %697 = vmatprep.subr.mxu0 0.0
        %698 = vmatpush1.msra.mxu0 0.0
        %699 = vmatprep.subr.mxu0 0.0
        %700 = vmatpush1.msra.mxu0 0.0
        %701 = vmatprep.subr.mxu0 0.0
        %702 = vmatpush1.msra.mxu0 0.0
        %703 = vmatprep.subr.mxu0 0.0
        %704 = vmatpush1.msra.mxu0 0.0
        %705 = vmatprep.subr.mxu0 0.0
        %706 = vmatpush1.msra.mxu0 0.0
        %707 = vmatprep.subr.mxu0 0.0
        %708 = vmatpush1.msra.mxu0 0.0
        %709 = vmatprep.subr.mxu0 0.0
        %710 = vmatpush1.msra.mxu0 0.0
        %711 = vmatprep.subr.mxu0 0.0
        %712 = vmatpush1.msra.mxu0 0.0
        %713 = vmatprep.subr.mxu0 0.0
        %714 = vmatpush1.msra.mxu0 0.0
        %715 = vmatprep.subr.mxu0 0.0
        %716 = vmatpush1.msra.mxu0 0.0
        %717 = vmatprep.subr.mxu0 0.0
        %718 = vmatpush1.msra.mxu0 0.0
        %719 = vmatprep.subr.mxu0 0.0
        %720 = vmatpush1.msra.mxu0 0.0
        %721 = vmatprep.subr.mxu0 0.0
        %722 = vmatpush1.msra.mxu0 0.0
        %723 = vmatprep.subr.mxu0 0.0
        %724 = vmatpush1.msra.mxu0 0.0
        %725 = vmatprep.mubr.f32.mxu0 0.0
        %726 = vmatmul.mubr.f32.gmra.mrb[0].mxu0 %v656
        %v727 = vpop.f32.mrb[0].mxu0
        %v728 = vadd.f32 0.0, %v727
        %v729 = vpop.f32.mrb[0].mxu0
        %730 = vmatprep.mubr.f32.mxu0 0.0
        %731 = vmatmul.mubr.f32.gmra.mrb[0].mxu0 %v659
        %v732 = vpop.f32.mrb[0].mxu0
        %v733 = vadd.f32 0.0, %v732
        %v734 = vpop.f32.mrb[0].mxu0
        %735 = vdwg.mxu0
        %738 = vrot.lane.b32.xlu0 %v728, 32
        %v739 = vpop.permute.xlu0 %738
        %740 = vrot.lane.b32.xlu0 %v733, 32
        %v741 = vpop.permute.xlu0 %740
        %vm744 = vcmask 523520
        %745 = vst.msk [vmem:[#allocation2] sm:$0xff] %vm744, %v739
        %746 = vst.msk [vmem:[#allocation2 + $0x8] sm:$0xff] %vm744, %v741
        %v747 = vld [vmem:[%s511] sm:$0xff]
        %v748 = vld [vmem:[%s511 + $0x8] sm:$0xff]
        %v749 = vstv %s536
        %v750 = vmul.f32 %v747, %v749
        %v751 = vmul.f32 %v748, %v749
        %v752 = vstv %s537
        %v753 = vadd.f32 %v750, %v752
        %v754 = vadd.f32 %v751, %v752
        %v755 = vld [vmem:[%s525] sm:$0xff]
        %v756 = vld [vmem:[%s525 + $0x8] sm:$0xff]
        %v757 = vld [vmem:[%s7] sm:$0xff]
        %v758 = vld [vmem:[%s7 + $0x8] sm:$0xff]
        %v759 = vld [vmem:[%s8] sm:$0x1]
        %v761 = vlaneseq
        %v762 = vshrl.u32 %v761, 7
        %v763 = vsub.s32 0, %v762
        %v764 = vrot.slane %v759, %v763
        %v767 = vsel %vm570, %v755, 0
        %v770 = vsel %vm570, %v756, 0
        %772 = vmatprep.subr.mxu0 0.0
        %773 = vmatpush1.msra.mxu0 %v757
        %774 = vmatprep.subr.mxu0 0.0
        %775 = vmatpush1.msra.mxu0 %v758
        %776 = vmatprep.subr.mxu0 0.0
        %777 = vmatpush1.msra.mxu0 0.0
        %778 = vmatprep.subr.mxu0 0.0
        %779 = vmatpush1.msra.mxu0 0.0
        %780 = vmatprep.subr.mxu0 0.0
        %781 = vmatpush1.msra.mxu0 0.0
        %782 = vmatprep.subr.mxu0 0.0
        %783 = vmatpush1.msra.mxu0 0.0
        %784 = vmatprep.subr.mxu0 0.0
        %785 = vmatpush1.msra.mxu0 0.0
        %786 = vmatprep.subr.mxu0 0.0
        %787 = vmatpush1.msra.mxu0 0.0
        %788 = vmatprep.subr.mxu0 0.0
        %789 = vmatpush1.msra.mxu0 0.0
        %790 = vmatprep.subr.mxu0 0.0
        %791 = vmatpush1.msra.mxu0 0.0
        %792 = vmatprep.subr.mxu0 0.0
        %793 = vmatpush1.msra.mxu0 0.0
        %794 = vmatprep.subr.mxu0 0.0
        %795 = vmatpush1.msra.mxu0 0.0
        %796 = vmatprep.subr.mxu0 0.0
        %797 = vmatpush1.msra.mxu0 0.0
        %798 = vmatprep.subr.mxu0 0.0
        %799 = vmatpush1.msra.mxu0 0.0
        %800 = vmatprep.subr.mxu0 0.0
        %801 = vmatpush1.msra.mxu0 0.0
        %802 = vmatprep.subr.mxu0 0.0
        %803 = vmatpush1.msra.mxu0 0.0
        %804 = vmatprep.subr.mxu0 0.0
        %805 = vmatpush1.msra.mxu0 0.0
        %806 = vmatprep.subr.mxu0 0.0
        %807 = vmatpush1.msra.mxu0 0.0
        %808 = vmatprep.subr.mxu0 0.0
        %809 = vmatpush1.msra.mxu0 0.0
        %810 = vmatprep.subr.mxu0 0.0
        %811 = vmatpush1.msra.mxu0 0.0
        %812 = vmatprep.subr.mxu0 0.0
        %813 = vmatpush1.msra.mxu0 0.0
        %814 = vmatprep.subr.mxu0 0.0
        %815 = vmatpush1.msra.mxu0 0.0
        %816 = vmatprep.subr.mxu0 0.0
        %817 = vmatpush1.msra.mxu0 0.0
        %818 = vmatprep.subr.mxu0 0.0
        %819 = vmatpush1.msra.mxu0 0.0
        %820 = vmatprep.subr.mxu0 0.0
        %821 = vmatpush1.msra.mxu0 0.0
        %822 = vmatprep.subr.mxu0 0.0
        %823 = vmatpush1.msra.mxu0 0.0
        %824 = vmatprep.subr.mxu0 0.0
        %825 = vmatpush1.msra.mxu0 0.0
        %826 = vmatprep.subr.mxu0 0.0
        %827 = vmatpush1.msra.mxu0 0.0
        %828 = vmatprep.subr.mxu0 0.0
        %829 = vmatpush1.msra.mxu0 0.0
        %830 = vmatprep.subr.mxu0 0.0
        %831 = vmatpush1.msra.mxu0 0.0
        %832 = vmatprep.subr.mxu0 0.0
        %833 = vmatpush1.msra.mxu0 0.0
        %834 = vmatprep.subr.mxu0 0.0
        %835 = vmatpush1.msra.mxu0 0.0
        %836 = vmatprep.mubr.f32.mxu0 0.0
        %837 = vmatmul.mubr.f32.gmra.mrb[0].mxu0 %v767
        %v838 = vpop.f32.mrb[0].mxu0
        %v839 = vadd.f32 %v764, %v838
        %v840 = vpop.f32.mrb[0].mxu0
        %841 = vmatprep.mubr.f32.mxu0 0.0
        %842 = vmatmul.mubr.f32.gmra.mrb[0].mxu0 %v770
        %v843 = vpop.f32.mrb[0].mxu0
        %v844 = vadd.f32 %v764, %v843
        %v845 = vpop.f32.mrb[0].mxu0
        %846 = vdwg.mxu0
        %849 = vrot.lane.b32.xlu0 %v839, 32
        %v850 = vpop.permute.xlu0 %849
        %851 = vrot.lane.b32.xlu0 %v844, 32
        %v852 = vpop.permute.xlu0 %851
        %v855 = vsel %vm652, %v753, %v850
        %v856 = vsel %vm652, %v754, %v852
        %v857 = vxor.u32 %v855, 2147483648
        %v858 = vxor.u32 %v856, 2147483648
        %v859 = vmul.f32 %v857, 1.442695
        %v860 = vpow.pop %v859
        %v861 = vmul.f32 %v858, 1.442695
        %v862 = vpow.pop %v861
        %v863 = vadd.f32 %v860, 1.0
        %v864 = vadd.f32 %v862, 1.0
        %v865 = vrcp.pop %v863
        %v866 = vmul.f32 1.0, %v865
        %v867 = vrcp.pop %v864
        %v868 = vmul.f32 1.0, %v867
        %v869 = vmul.f32 %v855, %v866
        %v870 = vmul.f32 %v856, %v868
        %873 = vrot.lane.b32.xlu0 %v869, 64
        %v874 = vpop.permute.xlu0 %873
        %875 = vrot.lane.b32.xlu0 %v870, 64
        %v876 = vpop.permute.xlu0 %875
        %vm879 = vcmask 1048064
        %880 = vst.msk [vmem:[#allocation2] sm:$0xff] %vm879, %v874
        %881 = vst.msk [vmem:[#allocation2 + $0x8] sm:$0xff] %vm879, %v876
        %v882 = vld [vmem:[#allocation2] sm:$0xff]
        %v883 = vld [vmem:[#allocation2 + $0x8] sm:$0xff]
        %v884 = vld [vmem:[%s9] sm:$0xff]
        %v885 = vld [vmem:[%s9 + $0x8] sm:$0xff]
        %v886 = vld [vmem:[%s9 + $0x10] sm:$0xff]
        %v887 = vld [vmem:[%s9 + $0x18] sm:$0xff]
        %v888 = vld [vmem:[%s9 + $0x20] sm:$0xff]
        %v889 = vld [vmem:[%s9 + $0x28] sm:$0xff]
        %v890 = vld [vmem:[%s9 + $0x30] sm:$0xff]
        %v891 = vld [vmem:[%s9 + $0x38] sm:$0xff]
        %v892 = vld [vmem:[%s9 + $0x40] sm:$0xff]
        %v893 = vld [vmem:[%s9 + $0x48] sm:$0xff]
        %v894 = vld [vmem:[%s9 + $0x50] sm:$0xff]
        %v895 = vld [vmem:[%s9 + $0x58] sm:$0xff]
        %v896 = vld [vmem:[%s9 + $0x60] sm:$0xff]
        %v897 = vld [vmem:[%s9 + $0x68] sm:$0xff]
        %v898 = vld [vmem:[%s9 + $0x70] sm:$0xff]
        %v899 = vld [vmem:[%s9 + $0x78] sm:$0xff]
        %v900 = vld [vmem:[%s10] sm:$0x1]
        %v902 = vlaneseq
        %v903 = vshrl.u32 %v902, 7
        %v904 = vsub.s32 0, %v903
        %v905 = vrot.slane %v900, %v904
        %907 = vmatprep.subr.mxu0 0.0
        %908 = vmatpush1.msra.mxu0 %v884
        %909 = vmatprep.subr.mxu0 0.0
        %910 = vmatpush1.msra.mxu0 %v885
        %911 = vmatprep.subr.mxu0 0.0
        %912 = vmatpush1.msra.mxu0 %v886
        %913 = vmatprep.subr.mxu0 0.0
        %914 = vmatpush1.msra.mxu0 %v887
        %915 = vmatprep.subr.mxu0 0.0
        %916 = vmatpush1.msra.mxu0 %v888
        %917 = vmatprep.subr.mxu0 0.0
        %918 = vmatpush1.msra.mxu0 %v889
        %919 = vmatprep.subr.mxu0 0.0
        %920 = vmatpush1.msra.mxu0 %v890
        %921 = vmatprep.subr.mxu0 0.0
        %922 = vmatpush1.msra.mxu0 %v891
        %923 = vmatprep.subr.mxu0 0.0
        %924 = vmatpush1.msra.mxu0 %v892
        %925 = vmatprep.subr.mxu0 0.0
        %926 = vmatpush1.msra.mxu0 %v893
        %927 = vmatprep.subr.mxu0 0.0
        %928 = vmatpush1.msra.mxu0 %v894
        %929 = vmatprep.subr.mxu0 0.0
        %930 = vmatpush1.msra.mxu0 %v895
        %931 = vmatprep.subr.mxu0 0.0
        %932 = vmatpush1.msra.mxu0 %v896
        %933 = vmatprep.subr.mxu0 0.0
        %934 = vmatpush1.msra.mxu0 %v897
        %935 = vmatprep.subr.mxu0 0.0
        %936 = vmatpush1.msra.mxu0 %v898
        %937 = vmatprep.subr.mxu0 0.0
        %938 = vmatpush1.msra.mxu0 %v899
        %939 = vmatprep.subr.mxu0 0.0
        %940 = vmatpush1.msra.mxu0 0.0
        %941 = vmatprep.subr.mxu0 0.0
        %942 = vmatpush1.msra.mxu0 0.0
        %943 = vmatprep.subr.mxu0 0.0
        %944 = vmatpush1.msra.mxu0 0.0
        %945 = vmatprep.subr.mxu0 0.0
        %946 = vmatpush1.msra.mxu0 0.0
        %947 = vmatprep.subr.mxu0 0.0
        %948 = vmatpush1.msra.mxu0 0.0
        %949 = vmatprep.subr.mxu0 0.0
        %950 = vmatpush1.msra.mxu0 0.0
        %951 = vmatprep.subr.mxu0 0.0
        %952 = vmatpush1.msra.mxu0 0.0
        %953 = vmatprep.subr.mxu0 0.0
        %954 = vmatpush1.msra.mxu0 0.0
        %955 = vmatprep.subr.mxu0 0.0
        %956 = vmatpush1.msra.mxu0 0.0
        %957 = vmatprep.subr.mxu0 0.0
        %958 = vmatpush1.msra.mxu0 0.0
        %959 = vmatprep.subr.mxu0 0.0
        %960 = vmatpush1.msra.mxu0 0.0
        %961 = vmatprep.subr.mxu0 0.0
        %962 = vmatpush1.msra.mxu0 0.0
        %963 = vmatprep.subr.mxu0 0.0
        %964 = vmatpush1.msra.mxu0 0.0
        %965 = vmatprep.subr.mxu0 0.0
        %966 = vmatpush1.msra.mxu0 0.0
        %967 = vmatprep.subr.mxu0 0.0
        %968 = vmatpush1.msra.mxu0 0.0
        %969 = vmatprep.subr.mxu0 0.0
        %970 = vmatpush1.msra.mxu0 0.0
        %971 = vmatprep.mubr.f32.mxu0 0.0
        %972 = vmatmul.mubr.f32.gmra.mrb[0].mxu0 %v882
        %v973 = vpop.f32.mrb[0].mxu0
        %v974 = vadd.f32 %v905, %v973
        %v975 = vpop.f32.mrb[0].mxu0
        %976 = vmatprep.mubr.f32.mxu0 0.0
        %977 = vmatmul.mubr.f32.gmra.mrb[0].mxu0 %v883
        %v978 = vpop.f32.mrb[0].mxu0
        %v979 = vadd.f32 %v905, %v978
        %v980 = vpop.f32.mrb[0].mxu0
        %981 = vdwg.mxu0
        %v982 = vxor.u32 %v974, 2147483648
        %v983 = vxor.u32 %v979, 2147483648
        %v984 = vmul.f32 %v982, 1.442695
        %v985 = vpow.pop %v984
        %v986 = vmul.f32 %v983, 1.442695
        %v987 = vpow.pop %v986
        %v988 = vadd.f32 %v985, 1.0
        %v989 = vadd.f32 %v987, 1.0
        %v990 = vrcp.pop %v988
        %v991 = vmul.f32 1.0, %v990
        %v992 = vrcp.pop %v989
        %v993 = vmul.f32 1.0, %v992
        %v994 = vmul.f32 %v974, %v991
        %v995 = vmul.f32 %v979, %v993
        %996 = vst.msk [vmem:[%s474] sm:$0xff] %vm652, %v994
        %997 = vst.msk [vmem:[%s474 + $0x8] sm:$0xff] %vm652, %v995
        %s998 = sand.u32 %s283, 1
        %s999 = sand.u32 %s283, 1
        %s1000 = smul.addr %s999, 16
        %s1001 = scalar_lea.vmem [#allocation5], %s1000
        // Predicated region
        $region65: #{tpu_custom_call.1} parent=63 // pred_check
          %p1002 = pneg %p293
        $region66: #{tpu_custom_call.1} parent=63 // pred_check_branch
          %1004 = sbr.rel (%p1002) target = $region68
        $region67: #{tpu_custom_call.1} parent=63 // pred_region
          %s1005 = smul.u32 2, %s24
          %s1006 = ssub.s32 5, %s1005
          %p1007 = scmp.lt.s32.totalorder %s1006, 2
          %s1008 = scalar_select %p1007, %s1006, 2
          %s1009 = smul.u32 128, %s1008
          %p1010 = scmp.ne.s32.totalorder 0, %s1009
          %s1011 = smul.addr %s1005, 8
          %s1012 = scalar_lea.vmem %s11, %s1011
          // Predicated region
          $region69: #{tpu_custom_call.1} parent=67 // pred_check
            %p1013 = pneg %p1010
          $region70: #{tpu_custom_call.1} parent=67 // pred_check_branch
            %1015 = sbr.rel (%p1013) target = $region72
          $region71: #{tpu_custom_call.1} parent=67 // pred_region
            // Predicated region
            $region73: #{tpu_custom_call.1} parent=71 // pred_check
              _
            $region74: #{tpu_custom_call.1} parent=71 // pred_check_branch
              %1017 = sbr.rel (0) target = $region76
            $region75: #{tpu_custom_call.1} parent=71 // pred_region
              // Predicated region
              $region95: #{tpu_custom_call.1} parent=75 // pred_check
                _
              $region96: #{tpu_custom_call.1} parent=75 // pred_check_branch
                %1068 = sbr.rel (0) target = $region98
              $region97: #{tpu_custom_call.1} parent=75 // pred_region
                %s1069 = sshrl.u32 %s1008, 1
                // While loop
                $region99: #{tpu_custom_call.1} parent=97 // loop_pre_header
                  _
                $region100: #{tpu_custom_call.1} parent=97 // loop_header
                  %s1071 = sphi 0, %s1073
                  %p1072 = scmp.ge.s32.totalorder %s1071, %s1069
                  %s1076 = sphi 0, %s1085
                  %s1077 = sphi %s1001, %s1088
                  %s1078 = sphi %s1012, %s1089
                $region101: #{tpu_custom_call.1} parent=97 // loop_header_branch
                  %1075 = sbr.rel (%p1072) target = $region105
                $region102: #{tpu_custom_call.1} parent=97 // loop_body
                  %v1079 = vld [vmem:[%s1077] sm:$0xff]
                  %1080 = vst [vmem:[%s1078] sm:$0xff] %v1079
                  %v1081 = vld [vmem:[%s1077 + $0x8] sm:$0xff]
                  %1082 = vst [vmem:[%s1078 + $0x8] sm:$0xff] %v1081
                  %s1083 = sadd.s32 1, %s1076
                  %p1084 = scmp.ge.s32.totalorder %s1083, %s1069
                  %s1085 = scalar_select %p1084, 0, %s1083
                  %s1086 = smul.u32 %s1085, 16
                  %s1087 = smul.u32 %s1085, 16
                  %s1088 = scalar_lea.vmem %s1001, %s1086 [#allocation5]
                  %s1089 = scalar_lea.vmem %s1012, %s1087
                $region103: #{tpu_custom_call.1} parent=97 // loop_footer
                  %s1073 = sadd.s32 %s1071, 1
                $region104: #{tpu_custom_call.1} parent=97 // loop_footer_branch
                  %1070 = sbr.rel target = $region100
                $region105: #{tpu_custom_call.1} parent=97 // loop_exit
                  _
                %s1090 = sshrl.u32 %s1008, 1
                %s1091 = sand.u32 %s1008, 1
                %s1092 = smul.u32 %s1090, 2
                %s1093 = smul.u32 8, %s1092
                %s1094 = scalar_lea.vmem %s1001, %s1093 [#allocation5]
                %s1095 = smul.u32 8, %s1092
                %s1096 = scalar_lea.vmem %s1012, %s1095
                // While loop
                $region106: #{tpu_custom_call.1} parent=97 // loop_pre_header
                  _
                $region107: #{tpu_custom_call.1} parent=97 // loop_header
                  %s1098 = sphi 0, %s1100
                  %p1099 = scmp.ge.s32.totalorder %s1098, %s1091
                  %s1103 = sphi 0, %s1110
                  %s1104 = sphi %s1094, %s1113
                  %s1105 = sphi %s1096, %s1114
                $region108: #{tpu_custom_call.1} parent=97 // loop_header_branch
                  %1102 = sbr.rel (%p1099) target = $region112
                $region109: #{tpu_custom_call.1} parent=97 // loop_body
                  %v1106 = vld [vmem:[%s1104] sm:$0xff]
                  %1107 = vst [vmem:[%s1105] sm:$0xff] %v1106
                  %s1108 = sadd.s32 1, %s1103
                  %p1109 = scmp.ge.s32.totalorder %s1108, %s1091
                  %s1110 = scalar_select %p1109, 0, %s1108
                  %s1111 = smul.u32 %s1110, 8
                  %s1112 = smul.u32 %s1110, 8
                  %s1113 = scalar_lea.vmem %s1094, %s1111 [#allocation5]
                  %s1114 = scalar_lea.vmem %s1096, %s1112
                $region110: #{tpu_custom_call.1} parent=97 // loop_footer
                  %s1100 = sadd.s32 %s1098, 1
                $region111: #{tpu_custom_call.1} parent=97 // loop_footer_branch
                  %1097 = sbr.rel target = $region107
                $region112: #{tpu_custom_call.1} parent=97 // loop_exit
                  _
              $region98: #{tpu_custom_call.1} parent=75 // pred_fallthru
                _
              // Predicated region
              $region113: #{tpu_custom_call.1} parent=75 // pred_check
                _
              $region114: #{tpu_custom_call.1} parent=75 // pred_check_branch
                %1116 = sbr.rel target = $region116
              $region115: #{tpu_custom_call.1} parent=75 // pred_region
                _
              $region116: #{tpu_custom_call.1} parent=75 // pred_fallthru
                _
            $region76: #{tpu_custom_call.1} parent=71 // pred_fallthru
              _
            // Predicated region
            $region77: #{tpu_custom_call.1} parent=71 // pred_check
              _
            $region78: #{tpu_custom_call.1} parent=71 // pred_check_branch
              %1019 = sbr.rel target = $region80
            $region79: #{tpu_custom_call.1} parent=71 // pred_region
              %s1021 = sshrl.u32 %s1008, 1
              // While loop
              $region81: #{tpu_custom_call.1} parent=79 // loop_pre_header
                _
              $region82: #{tpu_custom_call.1} parent=79 // loop_header
                %s1023 = sphi 0, %s1025
                %p1024 = scmp.ge.s32.totalorder %s1023, %s1021
                %s1028 = sphi 0, %s1037
                %s1029 = sphi %s1001, %s1040
                %s1030 = sphi %s1012, %s1041
              $region83: #{tpu_custom_call.1} parent=79 // loop_header_branch
                %1027 = sbr.rel (%p1024) target = $region87
              $region84: #{tpu_custom_call.1} parent=79 // loop_body
                %v1031 = vld [vmem:[%s1029] sm:$0xff]
                %1032 = vst [vmem:[%s1030] sm:$0xff] %v1031
                %v1033 = vld [vmem:[%s1029 + $0x8] sm:$0xff]
                %1034 = vst [vmem:[%s1030 + $0x8] sm:$0xff] %v1033
                %s1035 = sadd.s32 1, %s1028
                %p1036 = scmp.ge.s32.totalorder %s1035, %s1021
                %s1037 = scalar_select %p1036, 0, %s1035
                %s1038 = smul.u32 %s1037, 16
                %s1039 = smul.u32 %s1037, 16
                %s1040 = scalar_lea.vmem %s1001, %s1038 [#allocation5]
                %s1041 = scalar_lea.vmem %s1012, %s1039
              $region85: #{tpu_custom_call.1} parent=79 // loop_footer
                %s1025 = sadd.s32 %s1023, 1
              $region86: #{tpu_custom_call.1} parent=79 // loop_footer_branch
                %1022 = sbr.rel target = $region82
              $region87: #{tpu_custom_call.1} parent=79 // loop_exit
                _
              %s1042 = sshrl.u32 %s1008, 1
              %s1043 = sand.u32 %s1008, 1
              %s1044 = smul.u32 %s1042, 2
              %s1045 = smul.u32 8, %s1044
              %s1046 = scalar_lea.vmem %s1001, %s1045 [#allocation5]
              %s1047 = smul.u32 8, %s1044
              %s1048 = scalar_lea.vmem %s1012, %s1047
              // While loop
              $region88: #{tpu_custom_call.1} parent=79 // loop_pre_header
                _
              $region89: #{tpu_custom_call.1} parent=79 // loop_header
                %s1050 = sphi 0, %s1052
                %p1051 = scmp.ge.s32.totalorder %s1050, %s1043
                %s1055 = sphi 0, %s1062
                %s1056 = sphi %s1046, %s1065
                %s1057 = sphi %s1048, %s1066
              $region90: #{tpu_custom_call.1} parent=79 // loop_header_branch
                %1054 = sbr.rel (%p1051) target = $region94
              $region91: #{tpu_custom_call.1} parent=79 // loop_body
                %v1058 = vld [vmem:[%s1056] sm:$0xff]
                %1059 = vst [vmem:[%s1057] sm:$0xff] %v1058
                %s1060 = sadd.s32 1, %s1055
                %p1061 = scmp.ge.s32.totalorder %s1060, %s1043
                %s1062 = scalar_select %p1061, 0, %s1060
                %s1063 = smul.u32 %s1062, 8
                %s1064 = smul.u32 %s1062, 8
                %s1065 = scalar_lea.vmem %s1046, %s1063 [#allocation5]
                %s1066 = scalar_lea.vmem %s1048, %s1064
              $region92: #{tpu_custom_call.1} parent=79 // loop_footer
                %s1052 = sadd.s32 %s1050, 1
              $region93: #{tpu_custom_call.1} parent=79 // loop_footer_branch
                %1049 = sbr.rel target = $region89
              $region94: #{tpu_custom_call.1} parent=79 // loop_exit
                _
            $region80: #{tpu_custom_call.1} parent=71 // pred_fallthru
              _
          $region72: #{tpu_custom_call.1} parent=67 // pred_fallthru
            _
          %1117 = vnop
        $region68: #{tpu_custom_call.1} parent=63 // pred_fallthru
          _
      $region64: #{tpu_custom_call.1} parent=5 // pred_fallthru
        _
      %p1118 = scmp.le.s32.totalorder 2, %s19
      // Predicated region
      $region117: #{tpu_custom_call.1} parent=5 // pred_check
        %p1119 = pneg %p1118
      $region118: #{tpu_custom_call.1} parent=5 // pred_check_branch
        %1121 = sbr.rel (%p1119) target = $region120
      $region119: #{tpu_custom_call.1} parent=5 // pred_region
        %s1122 = ssub.s32 %s19, 2
        // Predicated region
        $region121: #{tpu_custom_call.1} parent=119 // pred_check
          %p1123 = pneg %p299
        $region122: #{tpu_custom_call.1} parent=119 // pred_check_branch
          %1125 = sbr.rel (%p1123) target = $region124
        $region123: #{tpu_custom_call.1} parent=119 // pred_region
          %s1126 = sand.u32 %s284, 1
          %s1127 = sand.u32 %s284, 1
          %s1128 = smul.addr %s1127, 16
          %s1129 = scalar_lea.vmem [#allocation5], %s1128
        $region124: #{tpu_custom_call.1} parent=119 // pred_fallthru
          _
      $region120: #{tpu_custom_call.1} parent=5 // pred_fallthru
        _
    $region6: #{tpu_custom_call.1} parent=1 // loop_footer
      %s23 = sadd.s32 1, %s19
    $region7: #{tpu_custom_call.1} parent=1 // loop_footer_branch
      %18 = sbr.rel target = $region3
    $region8: #{tpu_custom_call.1} parent=1 // loop_exit
      _

</llo_original>
